<compile_context>
chip_gen: v5e
topology: v5e:2x2
jax: 0.10.0
libtpu: 0.0.40
codegen_flags: <defaults>
</compile_context>

<pallas_src>
import functools
import math

import jax
import jax.numpy as jnp
import numpy as np
from jax import lax
from jax.experimental import pallas as pl
from jax.experimental.pallas import tpu as pltpu

HEAD = 4
EMBED = 32
D_K = EMBED // HEAD
SEQ = 8
BATCH = 2
NEG_INF_FILL = -1000000000.0    # matches masked_fill value in the PyTorch code
CROSS_BATCH_FILL = -2.0e9       # strictly below NEG_INF_FILL -> exp underflows to 0


def _mha_kernel(x_ref, w_ref, b_ref, wo_ref, bo_ref,
                qmask_ref, kmask_ref, mult_ref, bias_ref, hmask_ref, o_ref,
                *, batch, seq, head):
    bs = batch * seq

    # One fused MXU matmul computes all three input projections:
    # block-diag(q rows, k rows, v rows) @ [wq; wk; wv]  -> (3*B*S, E)
    y = jnp.dot(x_ref[...], w_ref[...],
                preferred_element_type=jnp.float32) + b_ref[...]

    qp = y[0:bs, :]             # (B*S, E) projected queries
    kp = y[bs:2 * bs, :]        # (B*S, E) projected keys
    vp = y[2 * bs:3 * bs, :]    # (B*S, E) projected values

    # (head, batch)-block-diagonal Q and batch-block-diagonal K so ONE matmul
    # produces every (batch, head) score block stacked along sublanes.
    q_rep = jnp.concatenate([qp] * head, axis=0)                      # (H*B*S, E)
    q_bd = jnp.concatenate([q_rep] * batch, axis=1) * qmask_ref[...]  # (H*B*S, B*E)
    k_bd = jnp.concatenate([kp] * batch, axis=1) * kmask_ref[...]     # (B*S, B*E)

    scores = lax.dot_general(q_bd, k_bd, (((1,), (1,)), ((), ())),
                             preferred_element_type=jnp.float32)      # (H*B*S, B*S)
    # Exact masked_fill(mask==0, -1e9) + 1/sqrt(d_k) scaling as one madd;
    # cross-batch entries get -2e9 so they vanish exactly under softmax.
    scores = scores * mult_ref[...] + bias_ref[...]

    # Numerically stable softmax over keys (one reduction for all b, h, s).
    m = jnp.max(scores, axis=-1, keepdims=True)
    e = jnp.exp(scores - m)
    denom_inv = pl.reciprocal(jnp.sum(e, axis=-1, keepdims=True), approx=False)
    p = e * denom_inv                                                 # (H*B*S, B*S)

    # One context matmul for every (batch, head); fold the head blocks back to
    # (B*S, E) (== transpose(1,2).contiguous().view(B,-1,E) of the PyTorch code).
    ctx_bd = jnp.dot(p, vp, preferred_element_type=jnp.float32) * hmask_ref[...]
    ctx = ctx_bd[0:bs, :]
    for h in range(1, head):
        ctx = ctx + ctx_bd[h * bs:(h + 1) * bs, :]                    # (B*S, E)

    # Output projection (linears[3]); weight zero-padded to a full 128-lane
    # tile so the result store is lane-dense (unmasked).
    out = jnp.dot(ctx, wo_ref[...], preferred_element_type=jnp.float32) + bo_ref[...]
    o_ref[...] = out.astype(o_ref.dtype)


def multi_headed_attention(query, key, value, mask, params):
    """query/key/value: (B, S, E) f32; mask: (H, S, S); params stored [in, out]
    (transposed from nn.Linear) with biases (1, out)."""
    B, S, E = query.shape
    H = HEAD
    d_k = E // H
    bs = B * S
    n_out = ((E + 127) // 128) * 128  # lane-dense output width

    # --- Fused Q/K/V projection operands (block-diagonal X, stacked W). ---
    x_blk = jnp.zeros((3 * bs, 3 * E), jnp.float32)
    x_blk = x_blk.at[0:bs, 0:E].set(query.reshape(bs, E))
    x_blk = x_blk.at[bs:2 * bs, E:2 * E].set(key.reshape(bs, E))
    x_blk = x_blk.at[2 * bs:3 * bs, 2 * E:3 * E].set(value.reshape(bs, E))
    w_stack = jnp.concatenate([params["wq"], params["wk"], params["wv"]], axis=0)  # (3E, E)
    b_rows = jnp.concatenate([jnp.tile(params["bq"], (bs, 1)),
                              jnp.tile(params["bk"], (bs, 1)),
                              jnp.tile(params["bv"], (bs, 1))], axis=0)            # (3*B*S, E)

    # --- Lane-dense output projection (padded cols stay 0). ---
    wo_pad = jnp.zeros((E, n_out), jnp.float32).at[:, :E].set(params["wo"])
    bo_pad = jnp.zeros((1, n_out), jnp.float32).at[:, :E].set(params["bo"])

    # --- Precomputed block-diagonal / mask operands.  Row order r = (h, b, s). ---
    r = jnp.arange(H * bs)
    h_r = r // bs
    b_r = (r % bs) // S
    s_r = r % S

    cq = jnp.arange(B * E)
    qmask = ((b_r[:, None] == cq[None, :] // E) &
             (h_r[:, None] == (cq[None, :] % E) // d_k)).astype(jnp.float32)   # (H*B*S, B*E)
    rk = jnp.arange(bs)
    kmask = ((rk[:, None] // S) == cq[None, :] // E).astype(jnp.float32)       # (B*S, B*E)

    ck = jnp.arange(bs)
    same_batch = b_r[:, None] == ck[None, :] // S
    mask_vals = mask[h_r[:, None], s_r[:, None], (ck % S)[None, :]]            # (H*B*S, B*S)
    mult = jnp.where(same_batch & (mask_vals != 0),
                     1.0 / math.sqrt(d_k), 0.0).astype(jnp.float32)
    bias = jnp.where(same_batch,
                     jnp.where(mask_vals == 0, NEG_INF_FILL, 0.0),
                     CROSS_BATCH_FILL).astype(jnp.float32)

    ce = jnp.arange(E)
    hmask = (h_r[:, None] == ce[None, :] // d_k).astype(jnp.float32)           # (H*B*S, E)

    kernel = functools.partial(_mha_kernel, batch=B, seq=S, head=H)
    operands = (x_blk, w_stack, b_rows, wo_pad, bo_pad,
                qmask, kmask, mult, bias, hmask)

    def spec2d(a):
        return pl.BlockSpec(a.shape, lambda i: (0, 0))

    out_pad = pl.pallas_call(
        kernel,
        out_shape=jax.ShapeDtypeStruct((bs, n_out), query.dtype),
        grid=(1,),
        in_specs=[spec2d(a) for a in operands],
        out_specs=pl.BlockSpec((bs, n_out), lambda i: (0, 0)),
        compiler_params=pltpu.CompilerParams(dimension_semantics=("arbitrary",)),
    )(*operands)

    return out_pad[:, :E].reshape(B, S, E)


def _reference(query, key, value, mask, params):
    """Pure-JAX mirror of the PyTorch forward (eval mode) for validation."""
    B, S, E = query.shape

    def lin(x, w, b):
        return x @ w + b[0]

    qp = lin(query, params["wq"], params["bq"]).reshape(B, S, HEAD, D_K).transpose(0, 2, 1, 3)
    kp = lin(key, params["wk"], params["bk"]).reshape(B, S, HEAD, D_K).transpose(0, 2, 1, 3)
    vp = lin(value, params["wv"], params["bv"]).reshape(B, S, HEAD, D_K).transpose(0, 2, 1, 3)

    scores = jnp.einsum("bhqd,bhkd->bhqk", qp, kp) / math.sqrt(D_K)
    scores = jnp.where(mask[None] == 0, NEG_INF_FILL, scores)
    p = jax.nn.softmax(scores, axis=-1)
    ctx = jnp.einsum("bhqk,bhkd->bhqd", p, vp)
    ctx = ctx.transpose(0, 2, 1, 3).reshape(B, S, E)
    return lin(ctx, params["wo"], params["bo"])


if __name__ == "__main__":
    key0 = jax.random.PRNGKey(0)
    keys = jax.random.split(key0, 12)

    def w(k):
        return (0.02 * jax.random.normal(k, (EMBED, EMBED))).astype(jnp.float32)

    def b(k):
        return (0.02 * jax.random.normal(k, (1, EMBED))).astype(jnp.float32)

    params = {
        "wq": w(keys[0]), "bq": b(keys[1]),
        "wk": w(keys[2]), "bk": b(keys[3]),
        "wv": w(keys[4]), "bv": b(keys[5]),
        "wo": w(keys[6]), "bo": b(keys[7]),
    }

    query = jax.random.normal(keys[8], (BATCH, SEQ, EMBED), dtype=jnp.float32)
    key_in = jax.random.normal(keys[9], (BATCH, SEQ, EMBED), dtype=jnp.float32)
    value = jax.random.normal(keys[10], (BATCH, SEQ, EMBED), dtype=jnp.float32)

    # Non-trivial mask (causal), broadcast over batch exactly like mask.unsqueeze(0);
    # one fully-masked row to exercise exact masked_fill semantics (uniform attn).
    mask = jnp.broadcast_to(jnp.tril(jnp.ones((SEQ, SEQ), jnp.float32)),
                            (HEAD, SEQ, SEQ))
    mask = mask.at[1, 0, :].set(0.0)

    out = multi_headed_attention(query, key_in, value, mask, params)
    out = jax.block_until_ready(out)

    ref = _reference(query, key_in, value, mask, params)
    np.testing.assert_allclose(np.asarray(out), np.asarray(ref), rtol=1e-4, atol=1e-4)

    print("KERNEL_OK")
</pallas_src>

<mosaic_0001>
module attributes {stable_mosaic.version = 11 : i64} {
  func.func @_mha_kernel(%arg0: i32, %arg1: memref<48x96xf32, #tpu.memory_space<vmem>>, %arg2: memref<96x32xf32, #tpu.memory_space<vmem>>, %arg3: memref<48x32xf32, #tpu.memory_space<vmem>>, %arg4: memref<32x128xf32, #tpu.memory_space<vmem>>, %arg5: memref<1x128xf32, #tpu.memory_space<vmem>>, %arg6: memref<64x64xf32, #tpu.memory_space<vmem>>, %arg7: memref<16x64xf32, #tpu.memory_space<vmem>>, %arg8: memref<64x16xf32, #tpu.memory_space<vmem>>, %arg9: memref<64x16xf32, #tpu.memory_space<vmem>>, %arg10: memref<64x32xf32, #tpu.memory_space<vmem>>, %arg11: memref<16x128xf32, #tpu.memory_space<vmem>>) attributes {dimension_semantics = [#tpu.dimension_semantics<arbitrary>], iteration_bounds = array<i64: 1>, scalar_prefetch = 0 : i64, scratch_operands = 0 : i64, tpu.core_type = #tpu.core_type<tc>, window_params = [{pipeline_mode = #tpu.pipeline_mode<synchronous>, transform_indices = @transform_0, window_bounds = array<i64: 48, 96>}, {pipeline_mode = #tpu.pipeline_mode<synchronous>, transform_indices = @transform_1, window_bounds = array<i64: 96, 32>}, {pipeline_mode = #tpu.pipeline_mode<synchronous>, transform_indices = @transform_2, window_bounds = array<i64: 48, 32>}, {pipeline_mode = #tpu.pipeline_mode<synchronous>, transform_indices = @transform_3, window_bounds = array<i64: 32, 128>}, {pipeline_mode = #tpu.pipeline_mode<synchronous>, transform_indices = @transform_4, window_bounds = array<i64: 1, 128>}, {pipeline_mode = #tpu.pipeline_mode<synchronous>, transform_indices = @transform_5, window_bounds = array<i64: 64, 64>}, {pipeline_mode = #tpu.pipeline_mode<synchronous>, transform_indices = @transform_6, window_bounds = array<i64: 16, 64>}, {pipeline_mode = #tpu.pipeline_mode<synchronous>, transform_indices = @transform_7, window_bounds = array<i64: 64, 16>}, {pipeline_mode = #tpu.pipeline_mode<synchronous>, transform_indices = @transform_8, window_bounds = array<i64: 64, 16>}, {pipeline_mode = #tpu.pipeline_mode<synchronous>, transform_indices = @transform_9, window_bounds = array<i64: 64, 32>}, {pipeline_mode = #tpu.pipeline_mode<synchronous>, transform_indices = @transform_10, window_bounds = array<i64: 16, 128>}]} {
    %c0 = arith.constant 0 : index
    %c0_0 = arith.constant 0 : index
    %0 = vector.load %arg1[%c0, %c0_0] : memref<48x96xf32, #tpu.memory_space<vmem>>, vector<48x96xf32>
    %c0_1 = arith.constant 0 : index
    %c0_2 = arith.constant 0 : index
    %1 = vector.load %arg2[%c0_1, %c0_2] : memref<96x32xf32, #tpu.memory_space<vmem>>, vector<96x32xf32>
    %cst = arith.constant dense<0.000000e+00> : vector<48x32xf32>
    %2 = tpu.matmul %0, %1, %cst {dimension_numbers = #tpu.dot_dimension_numbers<[1], [0], [0], [1], [0, 0, 1, 1], [], []>} : vector<48x96xf32>, vector<96x32xf32>, vector<48x32xf32> -> vector<48x32xf32>
    %c0_3 = arith.constant 0 : index
    %c0_4 = arith.constant 0 : index
    %3 = vector.load %arg3[%c0_3, %c0_4] : memref<48x32xf32, #tpu.memory_space<vmem>>, vector<48x32xf32>
    %4 = arith.addf %2, %3 : vector<48x32xf32>
    %5 = vector.extract_strided_slice %4 {offsets = [0, 0], sizes = [16, 32], strides = [1, 1]} : vector<48x32xf32> to vector<16x32xf32>
    %6 = vector.extract_strided_slice %4 {offsets = [16, 0], sizes = [16, 32], strides = [1, 1]} : vector<48x32xf32> to vector<16x32xf32>
    %7 = vector.extract_strided_slice %4 {offsets = [32, 0], sizes = [16, 32], strides = [1, 1]} : vector<48x32xf32> to vector<16x32xf32>
    %8 = tpu.concatenate %5, %5, %5, %5 in 0 : vector<16x32xf32>, vector<16x32xf32>, vector<16x32xf32>, vector<16x32xf32> -> vector<64x32xf32>
    %9 = tpu.concatenate %8, %8 in 1 : vector<64x32xf32>, vector<64x32xf32> -> vector<64x64xf32>
    %c0_5 = arith.constant 0 : index
    %c0_6 = arith.constant 0 : index
    %10 = vector.load %arg6[%c0_5, %c0_6] : memref<64x64xf32, #tpu.memory_space<vmem>>, vector<64x64xf32>
    %11 = arith.mulf %9, %10 : vector<64x64xf32>
    %12 = tpu.concatenate %6, %6 in 1 : vector<16x32xf32>, vector<16x32xf32> -> vector<16x64xf32>
    %c0_7 = arith.constant 0 : index
    %c0_8 = arith.constant 0 : index
    %13 = vector.load %arg7[%c0_7, %c0_8] : memref<16x64xf32, #tpu.memory_space<vmem>>, vector<16x64xf32>
    %14 = arith.mulf %12, %13 : vector<16x64xf32>
    %cst_9 = arith.constant dense<0.000000e+00> : vector<64x16xf32>
    %15 = tpu.matmul %11, %14, %cst_9 {dimension_numbers = #tpu.dot_dimension_numbers<[1], [1], [0], [0], [0, 0, 1, 0], [], []>} : vector<64x64xf32>, vector<16x64xf32>, vector<64x16xf32> -> vector<64x16xf32>
    %c0_10 = arith.constant 0 : index
    %c0_11 = arith.constant 0 : index
    %16 = vector.load %arg8[%c0_10, %c0_11] : memref<64x16xf32, #tpu.memory_space<vmem>>, vector<64x16xf32>
    %17 = arith.mulf %15, %16 : vector<64x16xf32>
    %c0_12 = arith.constant 0 : index
    %c0_13 = arith.constant 0 : index
    %18 = vector.load %arg9[%c0_12, %c0_13] : memref<64x16xf32, #tpu.memory_space<vmem>>, vector<64x16xf32>
    %19 = arith.addf %17, %18 : vector<64x16xf32>
    %cst_14 = arith.constant dense<0xFF800000> : vector<64xf32>
    %20 = vector.multi_reduction <maximumf>, %19, %cst_14 [1] : vector<64x16xf32> to vector<64xf32>
    %21 = vector.shape_cast %20 : vector<64xf32> to vector<64x1xf32>
    %22 = vector.broadcast %21 : vector<64x1xf32> to vector<64x16xf32>
    %23 = arith.subf %19, %22 : vector<64x16xf32>
    %24 = math.exp %23 : vector<64x16xf32>
    %cst_15 = arith.constant dense<0.000000e+00> : vector<64xf32>
    %25 = vector.multi_reduction <add>, %24, %cst_15 [1] : vector<64x16xf32> to vector<64xf32>
    %26 = vector.shape_cast %25 : vector<64xf32> to vector<64x1xf32>
    %27 = tpu.reciprocal %26 : vector<64x1xf32> -> vector<64x1xf32>
    %28 = vector.broadcast %27 : vector<64x1xf32> to vector<64x16xf32>
    %29 = arith.mulf %24, %28 : vector<64x16xf32>
    %cst_16 = arith.constant dense<0.000000e+00> : vector<64x32xf32>
    %30 = tpu.matmul %29, %7, %cst_16 {dimension_numbers = #tpu.dot_dimension_numbers<[1], [0], [0], [1], [0, 0, 1, 1], [], []>} : vector<64x16xf32>, vector<16x32xf32>, vector<64x32xf32> -> vector<64x32xf32>
    %c0_17 = arith.constant 0 : index
    %c0_18 = arith.constant 0 : index
    %31 = vector.load %arg10[%c0_17, %c0_18] : memref<64x32xf32, #tpu.memory_space<vmem>>, vector<64x32xf32>
    %32 = arith.mulf %30, %31 : vector<64x32xf32>
    %33 = vector.extract_strided_slice %32 {offsets = [0, 0], sizes = [16, 32], strides = [1, 1]} : vector<64x32xf32> to vector<16x32xf32>
    %34 = vector.extract_strided_slice %32 {offsets = [16, 0], sizes = [16, 32], strides = [1, 1]} : vector<64x32xf32> to vector<16x32xf32>
    %35 = arith.addf %33, %34 : vector<16x32xf32>
    %36 = vector.extract_strided_slice %32 {offsets = [32, 0], sizes = [16, 32], strides = [1, 1]} : vector<64x32xf32> to vector<16x32xf32>
    %37 = arith.addf %35, %36 : vector<16x32xf32>
    %38 = vector.extract_strided_slice %32 {offsets = [48, 0], sizes = [16, 32], strides = [1, 1]} : vector<64x32xf32> to vector<16x32xf32>
    %39 = arith.addf %37, %38 : vector<16x32xf32>
    %c0_19 = arith.constant 0 : index
    %c0_20 = arith.constant 0 : index
    %40 = vector.load %arg4[%c0_19, %c0_20] : memref<32x128xf32, #tpu.memory_space<vmem>>, vector<32x128xf32>
    %cst_21 = arith.constant dense<0.000000e+00> : vector<16x128xf32>
    %41 = tpu.matmul %39, %40, %cst_21 {dimension_numbers = #tpu.dot_dimension_numbers<[1], [0], [0], [1], [0, 0, 1, 1], [], []>} : vector<16x32xf32>, vector<32x128xf32>, vector<16x128xf32> -> vector<16x128xf32>
    %c0_22 = arith.constant 0 : index
    %c0_23 = arith.constant 0 : index
    %42 = vector.load %arg5[%c0_22, %c0_23] : memref<1x128xf32, #tpu.memory_space<vmem>>, vector<1x128xf32>
    %43 = vector.broadcast %42 : vector<1x128xf32> to vector<16x128xf32>
    %44 = arith.addf %41, %43 : vector<16x128xf32>
    %c0_24 = arith.constant 0 : index
    %c0_25 = arith.constant 0 : index
    %45 = vector.load %arg11[%c0_24, %c0_25] : memref<16x128xf32, #tpu.memory_space<vmem>>, vector<16x128xf32>
    tpu.vector_store %arg11[%c0_24, %c0_25], %44 {strides = array<i32>} : memref<16x128xf32, #tpu.memory_space<vmem>>, vector<16x128xf32>,
    return
  }
  func.func @transform_0(%arg0: i32) -> (i32, i32) {
    %c0_i32 = arith.constant 0 : i32
    %c0_i32_0 = arith.constant 0 : i32
    %c0_i32_1 = arith.constant 0 : i32
    return %c0_i32, %c0_i32_0 : i32, i32
  }
  func.func @transform_1(%arg0: i32) -> (i32, i32) {
    %c0_i32 = arith.constant 0 : i32
    %c0_i32_0 = arith.constant 0 : i32
    %c0_i32_1 = arith.constant 0 : i32
    return %c0_i32, %c0_i32_0 : i32, i32
  }
  func.func @transform_2(%arg0: i32) -> (i32, i32) {
    %c0_i32 = arith.constant 0 : i32
    %c0_i32_0 = arith.constant 0 : i32
    %c0_i32_1 = arith.constant 0 : i32
    return %c0_i32, %c0_i32_0 : i32, i32
  }
  func.func @transform_3(%arg0: i32) -> (i32, i32) {
    %c0_i32 = arith.constant 0 : i32
    %c0_i32_0 = arith.constant 0 : i32
    %c0_i32_1 = arith.constant 0 : i32
    return %c0_i32, %c0_i32_0 : i32, i32
  }
  func.func @transform_4(%arg0: i32) -> (i32, i32) {
    %c0_i32 = arith.constant 0 : i32
    %c0_i32_0 = arith.constant 0 : i32
    %c0_i32_1 = arith.constant 0 : i32
    return %c0_i32, %c0_i32_0 : i32, i32
  }
  func.func @transform_5(%arg0: i32) -> (i32, i32) {
    %c0_i32 = arith.constant 0 : i32
    %c0_i32_0 = arith.constant 0 : i32
    %c0_i32_1 = arith.constant 0 : i32
    return %c0_i32, %c0_i32_0 : i32, i32
  }
  func.func @transform_6(%arg0: i32) -> (i32, i32) {
    %c0_i32 = arith.constant 0 : i32
    %c0_i32_0 = arith.constant 0 : i32
    %c0_i32_1 = arith.constant 0 : i32
    return %c0_i32, %c0_i32_0 : i32, i32
  }
  func.func @transform_7(%arg0: i32) -> (i32, i32) {
    %c0_i32 = arith.constant 0 : i32
    %c0_i32_0 = arith.constant 0 : i32
    %c0_i32_1 = arith.constant 0 : i32
    return %c0_i32, %c0_i32_0 : i32, i32
  }
  func.func @transform_8(%arg0: i32) -> (i32, i32) {
    %c0_i32 = arith.constant 0 : i32
    %c0_i32_0 = arith.constant 0 : i32
    %c0_i32_1 = arith.constant 0 : i32
    return %c0_i32, %c0_i32_0 : i32, i32
  }
  func.func @transform_9(%arg0: i32) -> (i32, i32) {
    %c0_i32 = arith.constant 0 : i32
    %c0_i32_0 = arith.constant 0 : i32
    %c0_i32_1 = arith.constant 0 : i32
    return %c0_i32, %c0_i32_0 : i32, i32
  }
  func.func @transform_10(%arg0: i32) -> (i32, i32) {
    %c0_i32 = arith.constant 0 : i32
    %c0_i32_0 = arith.constant 0 : i32
    %c0_i32_1 = arith.constant 0 : i32
    return %c0_i32, %c0_i32_0 : i32, i32
  }
}

</mosaic_0001>

<llo_original>
// kernel: tpu_custom_call.1
$region0: #{tpu_custom_call.1}
  #allocation0 [shape = 'u32[]', space=smem, size = 0x4, offset = 0x4, fixed_abs, tag = 'smem constant byte address 0x4 - core index']
  #allocation1 [shape = 'u32[72,128]{1,0:T(1,128)}', space=vmem, size = 0x9000, scoped, tag = 'internal scratch']
  %s0 = inlined_call_operand.vmem [shape: f32[48,96], index: 0, kind: input, shape index: {}]
  %s1 = inlined_call_operand.vmem [shape: f32[96,32], index: 1, kind: input, shape index: {}]
  %s2 = inlined_call_operand.vmem [shape: f32[48,32], index: 2, kind: input, shape index: {}]
  %s3 = inlined_call_operand.vmem [shape: f32[32,128], index: 3, kind: input, shape index: {}]
  %s4 = inlined_call_operand.vmem [shape: f32[1,128], index: 4, kind: input, shape index: {}]
  %s5 = inlined_call_operand.vmem [shape: f32[64,64], index: 5, kind: input, shape index: {}]
  %s6 = inlined_call_operand.vmem [shape: f32[16,64], index: 6, kind: input, shape index: {}]
  %s7 = inlined_call_operand.vmem [shape: f32[64,16], index: 7, kind: input, shape index: {}]
  %s8 = inlined_call_operand.vmem [shape: f32[64,16], index: 8, kind: input, shape index: {}]
  %s9 = inlined_call_operand.vmem [shape: f32[64,32], index: 9, kind: input, shape index: {}]
  %s10 = inlined_call_operand.hbm [shape: f32[16,128], index: 10, kind: output, shape index: {}]
  %s11 = sld [smem:[#allocation0]]
  $region50: #{tpu_custom_call.1} parent=0
    _
  %s13 = ssub.s32 1, %s11
  %s14 = scalar_select 0, %s13, %s11
  $region1: #{tpu_custom_call.1} parent=0
    #allocation2 [shape = 'u8[8192]{0}', space=vmem, size = 0x2000, scoped, tag = 'output window, operand 0, single buffered']
    #allocation3 [shape = 's32[1]{0}', space=sflag, size = 0x4, scoped, tag = 'scoped memory for tpu_custom_call.1']
    %15 = vsyncpa [#allocation3], 0
    // Predicated region
    $region2: #{tpu_custom_call.1} parent=1 // pred_check
      _
    $region3: #{tpu_custom_call.1} parent=1 // pred_check_branch
      %17 = sbr.rel (0) target = $region5
    $region4: #{tpu_custom_call.1} parent=1 // pred_region
      _
    $region5: #{tpu_custom_call.1} parent=1 // pred_fallthru
      _
    // Predicated region
    $region6: #{tpu_custom_call.1} parent=1 // pred_check
      _
    $region7: #{tpu_custom_call.1} parent=1 // pred_check_branch
      %19 = sbr.rel (0) target = $region9
    $region8: #{tpu_custom_call.1} parent=1 // pred_region
      _
    $region9: #{tpu_custom_call.1} parent=1 // pred_fallthru
      _
    // Predicated region
    $region10: #{tpu_custom_call.1} parent=1 // pred_check
      _
    $region11: #{tpu_custom_call.1} parent=1 // pred_check_branch
      %21 = sbr.rel (0) target = $region13
    $region12: #{tpu_custom_call.1} parent=1 // pred_region
      _
    $region13: #{tpu_custom_call.1} parent=1 // pred_fallthru
      _
    // Predicated region
    $region14: #{tpu_custom_call.1} parent=1 // pred_check
      _
    $region15: #{tpu_custom_call.1} parent=1 // pred_check_branch
      %23 = sbr.rel (0) target = $region17
    $region16: #{tpu_custom_call.1} parent=1 // pred_region
      _
    $region17: #{tpu_custom_call.1} parent=1 // pred_fallthru
      _
    // Predicated region
    $region18: #{tpu_custom_call.1} parent=1 // pred_check
      _
    $region19: #{tpu_custom_call.1} parent=1 // pred_check_branch
      %25 = sbr.rel (0) target = $region21
    $region20: #{tpu_custom_call.1} parent=1 // pred_region
      _
    $region21: #{tpu_custom_call.1} parent=1 // pred_fallthru
      _
    // Predicated region
    $region22: #{tpu_custom_call.1} parent=1 // pred_check
      _
    $region23: #{tpu_custom_call.1} parent=1 // pred_check_branch
      %27 = sbr.rel (0) target = $region25
    $region24: #{tpu_custom_call.1} parent=1 // pred_region
      _
    $region25: #{tpu_custom_call.1} parent=1 // pred_fallthru
      _
    // Predicated region
    $region26: #{tpu_custom_call.1} parent=1 // pred_check
      _
    $region27: #{tpu_custom_call.1} parent=1 // pred_check_branch
      %29 = sbr.rel (0) target = $region29
    $region28: #{tpu_custom_call.1} parent=1 // pred_region
      _
    $region29: #{tpu_custom_call.1} parent=1 // pred_fallthru
      _
    // Predicated region
    $region30: #{tpu_custom_call.1} parent=1 // pred_check
      _
    $region31: #{tpu_custom_call.1} parent=1 // pred_check_branch
      %31 = sbr.rel (0) target = $region33
    $region32: #{tpu_custom_call.1} parent=1 // pred_region
      _
    $region33: #{tpu_custom_call.1} parent=1 // pred_fallthru
      _
    // Predicated region
    $region34: #{tpu_custom_call.1} parent=1 // pred_check
      _
    $region35: #{tpu_custom_call.1} parent=1 // pred_check_branch
      %33 = sbr.rel (0) target = $region37
    $region36: #{tpu_custom_call.1} parent=1 // pred_region
      _
    $region37: #{tpu_custom_call.1} parent=1 // pred_fallthru
      _
    // Predicated region
    $region38: #{tpu_custom_call.1} parent=1 // pred_check
      _
    $region39: #{tpu_custom_call.1} parent=1 // pred_check_branch
      %35 = sbr.rel (0) target = $region41
    $region40: #{tpu_custom_call.1} parent=1 // pred_region
      _
    $region41: #{tpu_custom_call.1} parent=1 // pred_fallthru
      _
    %v36 = vld [vmem:[%s0] sm:$0xff]
    %v37 = vld [vmem:[%s0 + $0x8] sm:$0xff]
    %v38 = vld [vmem:[%s0 + $0x10] sm:$0xff]
    %v39 = vld [vmem:[%s0 + $0x18] sm:$0xff]
    %v40 = vld [vmem:[%s0 + $0x20] sm:$0xff]
    %v41 = vld [vmem:[%s0 + $0x28] sm:$0xff]
    %v42 = vld [vmem:[%s1] sm:$0xff]
    %v43 = vld [vmem:[%s1 + $0x8] sm:$0xff]
    %v44 = vld [vmem:[%s1 + $0x10] sm:$0xff]
    %v45 = vld [vmem:[%s1 + $0x18] sm:$0xff]
    %v46 = vld [vmem:[%s1 + $0x20] sm:$0xff]
    %v47 = vld [vmem:[%s1 + $0x28] sm:$0xff]
    %v48 = vld [vmem:[%s1 + $0x30] sm:$0xff]
    %v49 = vld [vmem:[%s1 + $0x38] sm:$0xff]
    %v50 = vld [vmem:[%s1 + $0x40] sm:$0xff]
    %v51 = vld [vmem:[%s1 + $0x48] sm:$0xff]
    %v52 = vld [vmem:[%s1 + $0x50] sm:$0xff]
    %v53 = vld [vmem:[%s1 + $0x58] sm:$0xff]
    %v54 = vld [vmem:[%s2] sm:$0xff]
    %v55 = vld [vmem:[%s2 + $0x8] sm:$0xff]
    %v56 = vld [vmem:[%s2 + $0x10] sm:$0xff]
    %v57 = vld [vmem:[%s2 + $0x18] sm:$0xff]
    %v58 = vld [vmem:[%s2 + $0x20] sm:$0xff]
    %v59 = vld [vmem:[%s2 + $0x28] sm:$0xff]
    %vm60 = vcmask 785408
    %v62 = vsel %vm60, %v36, 0
    %v65 = vsel %vm60, %v37, 0
    %v68 = vsel %vm60, %v38, 0
    %v71 = vsel %vm60, %v39, 0
    %v74 = vsel %vm60, %v40, 0
    %v77 = vsel %vm60, %v41, 0
    %79 = vmatpush.msra.mxu0 0.0
    %80 = vmatpush.msra.mxu0 0.0
    %81 = vmatpush.msra.mxu0 0.0
    %82 = vmatpush.msra.mxu0 0.0
    %83 = vmatpush.msra.mxu0 %v53
    %84 = vmatpush.msra.mxu0 %v52
    %85 = vmatpush.msra.mxu0 %v51
    %86 = vmatpush.msra.mxu0 %v50
    %87 = vmatpush.msra.mxu0 %v49
    %88 = vmatpush.msra.mxu0 %v48
    %89 = vmatpush.msra.mxu0 %v47
    %90 = vmatpush.msra.mxu0 %v46
    %91 = vmatpush.msra.mxu0 %v45
    %92 = vmatpush.msra.mxu0 %v44
    %93 = vmatpush.msra.mxu0 %v43
    %94 = vmatpush.msra.mxu0 %v42
    %95 = vmatmul.f32.gmra.mxu0 %v62
    %v96 = vpop.f32.mrf.mxu0
    %v97 = vadd.f32 %v54, %v96
    %98 = vmatmul.f32.gmra.mxu0 %v65
    %v99 = vpop.f32.mrf.mxu0
    %v100 = vadd.f32 %v55, %v99
    %101 = vmatmul.f32.gmra.mxu0 %v68
    %v102 = vpop.f32.mrf.mxu0
    %v103 = vadd.f32 %v56, %v102
    %104 = vmatmul.f32.gmra.mxu0 %v71
    %v105 = vpop.f32.mrf.mxu0
    %v106 = vadd.f32 %v57, %v105
    %107 = vmatmul.f32.gmra.mxu0 %v74
    %v108 = vpop.f32.mrf.mxu0
    %v109 = vadd.f32 %v58, %v108
    %110 = vmatmul.f32.gmra.mxu0 %v77
    %v111 = vpop.f32.mrf.mxu0
    %v112 = vadd.f32 %v59, %v111
    %113 = vdwg.mxu0
    %116 = vrot.lane.b32.xlu0 %v97, 32
    %v117 = vpop.permute.xlu0 %116
    %118 = vrot.lane.b32.xlu0 %v100, 32
    %v119 = vpop.permute.xlu0 %118
    %vm122 = vcmask 261120
    %v123 = vsel %vm122, %v97, %v117
    %v124 = vsel %vm122, %v100, %v119
    %v125 = vld [vmem:[%s5] sm:$0xff]
    %v126 = vld [vmem:[%s5 + $0x8] sm:$0xff]
    %v127 = vld [vmem:[%s5 + $0x10] sm:$0xff]
    %v128 = vld [vmem:[%s5 + $0x18] sm:$0xff]
    %v129 = vld [vmem:[%s5 + $0x20] sm:$0xff]
    %v130 = vld [vmem:[%s5 + $0x28] sm:$0xff]
    %v131 = vld [vmem:[%s5 + $0x30] sm:$0xff]
    %v132 = vld [vmem:[%s5 + $0x38] sm:$0xff]
    %v133 = vmul.f32 %v123, %v125
    %v134 = vmul.f32 %v124, %v126
    %v135 = vmul.f32 %v123, %v127
    %v136 = vmul.f32 %v124, %v128
    %v137 = vmul.f32 %v123, %v129
    %v138 = vmul.f32 %v124, %v130
    %v139 = vmul.f32 %v123, %v131
    %v140 = vmul.f32 %v124, %v132
    %143 = vrot.lane.b32.xlu0 %v103, 32
    %v144 = vpop.permute.xlu0 %143
    %145 = vrot.lane.b32.xlu0 %v106, 32
    %v146 = vpop.permute.xlu0 %145
    %v149 = vsel %vm122, %v103, %v144
    %v150 = vsel %vm122, %v106, %v146
    %v151 = vld [vmem:[%s6] sm:$0xff]
    %v152 = vld [vmem:[%s6 + $0x8] sm:$0xff]
    %v153 = vmul.f32 %v149, %v151
    %v154 = vmul.f32 %v150, %v152
    %vm155 = vcmask 523264
    %v157 = vsel %vm155, %v133, 0
    %v160 = vsel %vm155, %v134, 0
    %v163 = vsel %vm155, %v135, 0
    %v166 = vsel %vm155, %v136, 0
    %v169 = vsel %vm155, %v137, 0
    %v172 = vsel %vm155, %v138, 0
    %v175 = vsel %vm155, %v139, 0
    %v178 = vsel %vm155, %v140, 0
    %v181 = vsel %vm155, %v153, 0
    %v184 = vsel %vm155, %v154, 0
    %186 = vmatpush.xpose.msra.mxu0 0.0
    %187 = vmatpush.xpose.msra.mxu0 0.0
    %188 = vmatpush.xpose.msra.mxu0 0.0
    %189 = vmatpush.xpose.msra.mxu0 0.0
    %190 = vmatpush.xpose.msra.mxu0 0.0
    %191 = vmatpush.xpose.msra.mxu0 0.0
    %192 = vmatpush.xpose.msra.mxu0 0.0
    %193 = vmatpush.xpose.msra.mxu0 0.0
    %194 = vmatpush.xpose.msra.mxu0 0.0
    %195 = vmatpush.xpose.msra.mxu0 0.0
    %196 = vmatpush.xpose.msra.mxu0 0.0
    %197 = vmatpush.xpose.msra.mxu0 0.0
    %198 = vmatpush.xpose.msra.mxu0 0.0
    %199 = vmatpush.xpose.msra.mxu0 0.0
    %200 = vmatpush.xpose.msra.mxu0 %v184
    %201 = vmatpush.xpose.msra.mxu0 %v181
    %202 = vmatmul.f32.gmra.mxu0 %v157
    %v203 = vpop.f32.mrf.mxu0
    %v204 = vadd.f32 0.0, %v203
    %205 = vmatmul.f32.gmra.mxu0 %v160
    %v206 = vpop.f32.mrf.mxu0
    %v207 = vadd.f32 0.0, %v206
    %208 = vmatmul.f32.gmra.mxu0 %v163
    %v209 = vpop.f32.mrf.mxu0
    %v210 = vadd.f32 0.0, %v209
    %211 = vmatmul.f32.gmra.mxu0 %v166
    %v212 = vpop.f32.mrf.mxu0
    %v213 = vadd.f32 0.0, %v212
    %214 = vmatmul.f32.gmra.mxu0 %v169
    %v215 = vpop.f32.mrf.mxu0
    %v216 = vadd.f32 0.0, %v215
    %217 = vmatmul.f32.gmra.mxu0 %v172
    %v218 = vpop.f32.mrf.mxu0
    %v219 = vadd.f32 0.0, %v218
    %220 = vmatmul.f32.gmra.mxu0 %v175
    %v221 = vpop.f32.mrf.mxu0
    %v222 = vadd.f32 0.0, %v221
    %223 = vmatmul.f32.gmra.mxu0 %v178
    %v224 = vpop.f32.mrf.mxu0
    %v225 = vadd.f32 0.0, %v224
    %226 = vdwg.mxu0
    %v227 = vld [vmem:[%s7] sm:$0xff]
    %v228 = vld [vmem:[%s7 + $0x8] sm:$0xff]
    %v229 = vld [vmem:[%s7 + $0x10] sm:$0xff]
    %v230 = vld [vmem:[%s7 + $0x18] sm:$0xff]
    %v231 = vld [vmem:[%s7 + $0x20] sm:$0xff]
    %v232 = vld [vmem:[%s7 + $0x28] sm:$0xff]
    %v233 = vld [vmem:[%s7 + $0x30] sm:$0xff]
    %v234 = vld [vmem:[%s7 + $0x38] sm:$0xff]
    %v235 = vmul.f32 %v204, %v227
    %v236 = vmul.f32 %v207, %v228
    %v237 = vmul.f32 %v210, %v229
    %v238 = vmul.f32 %v213, %v230
    %v239 = vmul.f32 %v216, %v231
    %v240 = vmul.f32 %v219, %v232
    %v241 = vmul.f32 %v222, %v233
    %v242 = vmul.f32 %v225, %v234
    %v243 = vld [vmem:[%s8] sm:$0xff]
    %v244 = vld [vmem:[%s8 + $0x8] sm:$0xff]
    %v245 = vld [vmem:[%s8 + $0x10] sm:$0xff]
    %v246 = vld [vmem:[%s8 + $0x18] sm:$0xff]
    %v247 = vld [vmem:[%s8 + $0x20] sm:$0xff]
    %v248 = vld [vmem:[%s8 + $0x28] sm:$0xff]
    %v249 = vld [vmem:[%s8 + $0x30] sm:$0xff]
    %v250 = vld [vmem:[%s8 + $0x38] sm:$0xff]
    %v251 = vadd.f32 %v235, %v243
    %v252 = vadd.f32 %v236, %v244
    %v253 = vadd.f32 %v237, %v245
    %v254 = vadd.f32 %v238, %v246
    %v255 = vadd.f32 %v239, %v247
    %v256 = vadd.f32 %v240, %v248
    %v257 = vadd.f32 %v241, %v249
    %v258 = vadd.f32 %v242, %v250
    %vm259 = vcmask 130048
    %v260 = vsel %vm259, %v251, -inf
    %261 = vmax.xlane.f32.xlu0 %v260
    %v262 = vpop.xlane.xlu0 %261
    %v263 = vsel %vm259, %v252, -inf
    %264 = vmax.xlane.f32.xlu0 %v263
    %v265 = vpop.xlane.xlu0 %264
    %v266 = vsel %vm259, %v253, -inf
    %267 = vmax.xlane.f32.xlu0 %v266
    %v268 = vpop.xlane.xlu0 %267
    %v269 = vsel %vm259, %v254, -inf
    %270 = vmax.xlane.f32.xlu0 %v269
    %v271 = vpop.xlane.xlu0 %270
    %v272 = vsel %vm259, %v255, -inf
    %273 = vmax.xlane.f32.xlu0 %v272
    %v274 = vpop.xlane.xlu0 %273
    %v275 = vsel %vm259, %v256, -inf
    %276 = vmax.xlane.f32.xlu0 %v275
    %v277 = vpop.xlane.xlu0 %276
    %v278 = vsel %vm259, %v257, -inf
    %279 = vmax.xlane.f32.xlu0 %v278
    %v280 = vpop.xlane.xlu0 %279
    %v281 = vsel %vm259, %v258, -inf
    %282 = vmax.xlane.f32.xlu0 %v281
    %v283 = vpop.xlane.xlu0 %282
    %v284 = vsub.f32 %v251, %v262
    %v285 = vsub.f32 %v252, %v265
    %v286 = vsub.f32 %v253, %v268
    %v287 = vsub.f32 %v254, %v271
    %v288 = vsub.f32 %v255, %v274
    %v289 = vsub.f32 %v256, %v277
    %v290 = vsub.f32 %v257, %v280
    %v291 = vsub.f32 %v258, %v283
    %v292 = vmul.f32 %v284, 1.442695
    %v293 = vpow.pop %v292
    %v294 = vmul.f32 %v285, 1.442695
    %v295 = vpow.pop %v294
    %v296 = vmul.f32 %v286, 1.442695
    %v297 = vpow.pop %v296
    %v298 = vmul.f32 %v287, 1.442695
    %v299 = vpow.pop %v298
    %v300 = vmul.f32 %v288, 1.442695
    %v301 = vpow.pop %v300
    %v302 = vmul.f32 %v289, 1.442695
    %v303 = vpow.pop %v302
    %v304 = vmul.f32 %v290, 1.442695
    %v305 = vpow.pop %v304
    %v306 = vmul.f32 %v291, 1.442695
    %v307 = vpow.pop %v306
    %v308 = vsel %vm259, %v293, 0.0
    %309 = vadd.xlane.f32.xlu0 %v308
    %v310 = vpop.xlane.xlu0 %309
    %v311 = vsel %vm259, %v295, 0.0
    %312 = vadd.xlane.f32.xlu0 %v311
    %v313 = vpop.xlane.xlu0 %312
    %v314 = vsel %vm259, %v297, 0.0
    %315 = vadd.xlane.f32.xlu0 %v314
    %v316 = vpop.xlane.xlu0 %315
    %v317 = vsel %vm259, %v299, 0.0
    %318 = vadd.xlane.f32.xlu0 %v317
    %v319 = vpop.xlane.xlu0 %318
    %v320 = vsel %vm259, %v301, 0.0
    %321 = vadd.xlane.f32.xlu0 %v320
    %v322 = vpop.xlane.xlu0 %321
    %v323 = vsel %vm259, %v303, 0.0
    %324 = vadd.xlane.f32.xlu0 %v323
    %v325 = vpop.xlane.xlu0 %324
    %v326 = vsel %vm259, %v305, 0.0
    %327 = vadd.xlane.f32.xlu0 %v326
    %v328 = vpop.xlane.xlu0 %327
    %v329 = vsel %vm259, %v307, 0.0
    %330 = vadd.xlane.f32.xlu0 %v329
    %v331 = vpop.xlane.xlu0 %330
    %v332 = vrcp.pop %v310
    %v333 = vmul.f32 %v310, %v332
    %v334 = vsub.f32 1.0, %v333
    %v335 = vmul.f32 %v332, %v334
    %v336 = vadd.f32 %v332, %v335
    %vm337 = vweird.f32 %v310
    %vm338 = vweird.f32 %v332
    %vm339 = vmor %vm337, %vm338
    %v340 = vsel %vm339, %v332, %v336
    %v341 = vand.u32 2147483647, %v310
    %vm342 = vcmp.eq.f32.partialorder %v341, 8.507059e+37
    %v343 = vand.u32 %v310, 2147483648
    %v344 = vor.u32 1.1754944e-38, %v343
    %v345 = vsel %vm342, %v344, %v340
    %v346 = vrcp.pop %v313
    %v347 = vmul.f32 %v313, %v346
    %v348 = vsub.f32 1.0, %v347
    %v349 = vmul.f32 %v346, %v348
    %v350 = vadd.f32 %v346, %v349
    %vm351 = vweird.f32 %v313
    %vm352 = vweird.f32 %v346
    %vm353 = vmor %vm351, %vm352
    %v354 = vsel %vm353, %v346, %v350
    %v355 = vand.u32 2147483647, %v313
    %vm356 = vcmp.eq.f32.partialorder %v355, 8.507059e+37
    %v357 = vand.u32 %v313, 2147483648
    %v358 = vor.u32 1.1754944e-38, %v357
    %v359 = vsel %vm356, %v358, %v354
    %v360 = vrcp.pop %v316
    %v361 = vmul.f32 %v316, %v360
    %v362 = vsub.f32 1.0, %v361
    %v363 = vmul.f32 %v360, %v362
    %v364 = vadd.f32 %v360, %v363
    %vm365 = vweird.f32 %v316
    %vm366 = vweird.f32 %v360
    %vm367 = vmor %vm365, %vm366
    %v368 = vsel %vm367, %v360, %v364
    %v369 = vand.u32 2147483647, %v316
    %vm370 = vcmp.eq.f32.partialorder %v369, 8.507059e+37
    %v371 = vand.u32 %v316, 2147483648
    %v372 = vor.u32 1.1754944e-38, %v371
    %v373 = vsel %vm370, %v372, %v368
    %v374 = vrcp.pop %v319
    %v375 = vmul.f32 %v319, %v374
    %v376 = vsub.f32 1.0, %v375
    %v377 = vmul.f32 %v374, %v376
    %v378 = vadd.f32 %v374, %v377
    %vm379 = vweird.f32 %v319
    %vm380 = vweird.f32 %v374
    %vm381 = vmor %vm379, %vm380
    %v382 = vsel %vm381, %v374, %v378
    %v383 = vand.u32 2147483647, %v319
    %vm384 = vcmp.eq.f32.partialorder %v383, 8.507059e+37
    %v385 = vand.u32 %v319, 2147483648
    %v386 = vor.u32 1.1754944e-38, %v385
    %v387 = vsel %vm384, %v386, %v382
    %v388 = vrcp.pop %v322
    %v389 = vmul.f32 %v322, %v388
    %v390 = vsub.f32 1.0, %v389
    %v391 = vmul.f32 %v388, %v390
    %v392 = vadd.f32 %v388, %v391
    %vm393 = vweird.f32 %v322
    %vm394 = vweird.f32 %v388
    %vm395 = vmor %vm393, %vm394
    %v396 = vsel %vm395, %v388, %v392
    %v397 = vand.u32 2147483647, %v322
    %vm398 = vcmp.eq.f32.partialorder %v397, 8.507059e+37
    %v399 = vand.u32 %v322, 2147483648
    %v400 = vor.u32 1.1754944e-38, %v399
    %v401 = vsel %vm398, %v400, %v396
    %v402 = vrcp.pop %v325
    %v403 = vmul.f32 %v325, %v402
    %v404 = vsub.f32 1.0, %v403
    %v405 = vmul.f32 %v402, %v404
    %v406 = vadd.f32 %v402, %v405
    %vm407 = vweird.f32 %v325
    %vm408 = vweird.f32 %v402
    %vm409 = vmor %vm407, %vm408
    %v410 = vsel %vm409, %v402, %v406
    %v411 = vand.u32 2147483647, %v325
    %vm412 = vcmp.eq.f32.partialorder %v411, 8.507059e+37
    %v413 = vand.u32 %v325, 2147483648
    %v414 = vor.u32 1.1754944e-38, %v413
    %v415 = vsel %vm412, %v414, %v410
    %v416 = vrcp.pop %v328
    %v417 = vmul.f32 %v328, %v416
    %v418 = vsub.f32 1.0, %v417
    %v419 = vmul.f32 %v416, %v418
    %v420 = vadd.f32 %v416, %v419
    %vm421 = vweird.f32 %v328
    %vm422 = vweird.f32 %v416
    %vm423 = vmor %vm421, %vm422
    %v424 = vsel %vm423, %v416, %v420
    %v425 = vand.u32 2147483647, %v328
    %vm426 = vcmp.eq.f32.partialorder %v425, 8.507059e+37
    %v427 = vand.u32 %v328, 2147483648
    %v428 = vor.u32 1.1754944e-38, %v427
    %v429 = vsel %vm426, %v428, %v424
    %v430 = vrcp.pop %v331
    %v431 = vmul.f32 %v331, %v430
    %v432 = vsub.f32 1.0, %v431
    %v433 = vmul.f32 %v430, %v432
    %v434 = vadd.f32 %v430, %v433
    %vm435 = vweird.f32 %v331
    %vm436 = vweird.f32 %v430
    %vm437 = vmor %vm435, %vm436
    %v438 = vsel %vm437, %v430, %v434
    %v439 = vand.u32 2147483647, %v331
    %vm440 = vcmp.eq.f32.partialorder %v439, 8.507059e+37
    %v441 = vand.u32 %v331, 2147483648
    %v442 = vor.u32 1.1754944e-38, %v441
    %v443 = vsel %vm440, %v442, %v438
    %v444 = vmul.f32 %v293, %v345
    %v445 = vmul.f32 %v295, %v359
    %v446 = vmul.f32 %v297, %v373
    %v447 = vmul.f32 %v299, %v387
    %v448 = vmul.f32 %v301, %v401
    %v449 = vmul.f32 %v303, %v415
    %v450 = vmul.f32 %v305, %v429
    %v451 = vmul.f32 %v307, %v443
    %v453 = vsel %vm259, %v444, 0
    %v456 = vsel %vm259, %v445, 0
    %v459 = vsel %vm259, %v446, 0
    %v462 = vsel %vm259, %v447, 0
    %v465 = vsel %vm259, %v448, 0
    %v468 = vsel %vm259, %v449, 0
    %v471 = vsel %vm259, %v450, 0
    %v474 = vsel %vm259, %v451, 0
    %476 = vmatpush.msra.mxu0 0.0
    %477 = vmatpush.msra.mxu0 0.0
    %478 = vmatpush.msra.mxu0 0.0
    %479 = vmatpush.msra.mxu0 0.0
    %480 = vmatpush.msra.mxu0 0.0
    %481 = vmatpush.msra.mxu0 0.0
    %482 = vmatpush.msra.mxu0 0.0
    %483 = vmatpush.msra.mxu0 0.0
    %484 = vmatpush.msra.mxu0 0.0
    %485 = vmatpush.msra.mxu0 0.0
    %486 = vmatpush.msra.mxu0 0.0
    %487 = vmatpush.msra.mxu0 0.0
    %488 = vmatpush.msra.mxu0 0.0
    %489 = vmatpush.msra.mxu0 0.0
    %490 = vmatpush.msra.mxu0 %v112
    %491 = vmatpush.msra.mxu0 %v109
    %492 = vmatmul.f32.gmra.mxu0 %v453
    %v493 = vpop.f32.mrf.mxu0
    %v494 = vadd.f32 0.0, %v493
    %495 = vmatmul.f32.gmra.mxu0 %v456
    %v496 = vpop.f32.mrf.mxu0
    %v497 = vadd.f32 0.0, %v496
    %498 = vmatmul.f32.gmra.mxu0 %v459
    %v499 = vpop.f32.mrf.mxu0
    %v500 = vadd.f32 0.0, %v499
    %501 = vmatmul.f32.gmra.mxu0 %v462
    %v502 = vpop.f32.mrf.mxu0
    %v503 = vadd.f32 0.0, %v502
    %504 = vmatmul.f32.gmra.mxu0 %v465
    %v505 = vpop.f32.mrf.mxu0
    %v506 = vadd.f32 0.0, %v505
    %507 = vmatmul.f32.gmra.mxu0 %v468
    %v508 = vpop.f32.mrf.mxu0
    %v509 = vadd.f32 0.0, %v508
    %510 = vmatmul.f32.gmra.mxu0 %v471
    %v511 = vpop.f32.mrf.mxu0
    %v512 = vadd.f32 0.0, %v511
    %513 = vmatmul.f32.gmra.mxu0 %v474
    %v514 = vpop.f32.mrf.mxu0
    %v515 = vadd.f32 0.0, %v514
    %516 = vdwg.mxu0
    %v517 = vld [vmem:[%s9] sm:$0xff]
    %v518 = vld [vmem:[%s9 + $0x8] sm:$0xff]
    %v519 = vld [vmem:[%s9 + $0x10] sm:$0xff]
    %v520 = vld [vmem:[%s9 + $0x18] sm:$0xff]
    %v521 = vld [vmem:[%s9 + $0x20] sm:$0xff]
    %v522 = vld [vmem:[%s9 + $0x28] sm:$0xff]
    %v523 = vld [vmem:[%s9 + $0x30] sm:$0xff]
    %v524 = vld [vmem:[%s9 + $0x38] sm:$0xff]
    %v525 = vmul.f32 %v494, %v517
    %v526 = vmul.f32 %v497, %v518
    %v527 = vmul.f32 %v500, %v519
    %v528 = vmul.f32 %v503, %v520
    %v529 = vmul.f32 %v506, %v521
    %v530 = vmul.f32 %v509, %v522
    %v531 = vmul.f32 %v512, %v523
    %v532 = vmul.f32 %v515, %v524
    %v533 = vadd.f32 %v525, %v527
    %v534 = vadd.f32 %v526, %v528
    %v535 = vadd.f32 %v533, %v529
    %v536 = vadd.f32 %v534, %v530
    %v537 = vadd.f32 %v535, %v531
    %v538 = vadd.f32 %v536, %v532
    %v539 = vld [vmem:[%s3] sm:$0xff]
    %v540 = vld [vmem:[%s3 + $0x8] sm:$0xff]
    %v541 = vld [vmem:[%s3 + $0x10] sm:$0xff]
    %v542 = vld [vmem:[%s3 + $0x18] sm:$0xff]
    %v543 = vld [vmem:[%s4] sm:$0x1]
    %v545 = vperm.slane %v543, 0
    %v548 = vsel %vm122, %v537, 0
    %v551 = vsel %vm122, %v538, 0
    %553 = vmatpush.msra.mxu0 0.0
    %554 = vmatpush.msra.mxu0 0.0
    %555 = vmatpush.msra.mxu0 0.0
    %556 = vmatpush.msra.mxu0 0.0
    %557 = vmatpush.msra.mxu0 0.0
    %558 = vmatpush.msra.mxu0 0.0
    %559 = vmatpush.msra.mxu0 0.0
    %560 = vmatpush.msra.mxu0 0.0
    %561 = vmatpush.msra.mxu0 0.0
    %562 = vmatpush.msra.mxu0 0.0
    %563 = vmatpush.msra.mxu0 0.0
    %564 = vmatpush.msra.mxu0 0.0
    %565 = vmatpush.msra.mxu0 %v542
    %566 = vmatpush.msra.mxu0 %v541
    %567 = vmatpush.msra.mxu0 %v540
    %568 = vmatpush.msra.mxu0 %v539
    %569 = vmatmul.f32.gmra.mxu0 %v548
    %v570 = vpop.f32.mrf.mxu0
    %v571 = vadd.f32 %v545, %v570
    %572 = vmatmul.f32.gmra.mxu0 %v551
    %v573 = vpop.f32.mrf.mxu0
    %v574 = vadd.f32 %v545, %v573
    %575 = vdwg.mxu0
    %576 = vst [vmem:[#allocation2] sm:$0xff] %v571
    %577 = vst [vmem:[#allocation2 + $0x8] sm:$0xff] %v574
    // Predicated region
    $region42: #{tpu_custom_call.1} parent=1 // pred_check
      _
    $region43: #{tpu_custom_call.1} parent=1 // pred_check_branch
      %579 = sbr.rel (0) target = $region45
    $region44: #{tpu_custom_call.1} parent=1 // pred_region
      %581 = vsyncadd [#allocation3], 0
      %s582 = sshll.u32 [#allocation2], 4
      %s583 = int_to_ptr.vmem [resolvable:$true] %s582
      %s584 = sshll.u32 %s10, 4
      %s585 = int_to_ptr.hbm [resolvable:$true] %s584
      %590 = dma.vmem_to_hbm [thread:$0]  %s583, 256, %s585, [#allocation3], 128, 128, 8
    $region45: #{tpu_custom_call.1} parent=1 // pred_fallthru
      _
    // Predicated region
    $region46: #{tpu_custom_call.1} parent=1 // pred_check
      _
    $region47: #{tpu_custom_call.1} parent=1 // pred_check_branch
      %592 = sbr.rel (0) target = $region49
    $region48: #{tpu_custom_call.1} parent=1 // pred_region
      %594 = dma.done [#allocation3], 256
    $region49: #{tpu_custom_call.1} parent=1 // pred_fallthru
      _
    %595 = vsyncpa [#allocation3], 1

</llo_original>
